<compile_context>
chip_gen: v7x
topology: tpu7x:2x2x1
jax: 0.10.0
libtpu: 0.0.40
codegen_flags: <defaults>
</compile_context>

<pallas_src>
import jax
import jax.numpy as jnp
from jax.experimental import pallas as pl
from jax.experimental.pallas import tpu as pltpu

LANE = 128   # vreg lane width (last dim)
SUB = 16     # batch-tile granularity (covers f32 and bf16 sublane packing)


def _round_up(x, m):
    return (x + m - 1) // m * m


# ---------------------------------------------------------------------------
# Kernel
# ---------------------------------------------------------------------------
def discriminator_kernel(x_ref, w1_ref, b1_ref, w2_ref, b2_ref, o_ref):
    # Hidden layer: (TB, D_in) @ (D_in, H_pad) on the MXU, f32 accumulation.
    h = jnp.dot(x_ref[...], w1_ref[...], preferred_element_type=jnp.float32)
    h = h + b1_ref[...]
    # Leaky ReLU (negative_slope = 0.01): one mul + max on the VPU, kept in f32
    # (v5e has no bf16 VPU/EUP datapath).
    h = jnp.maximum(h, 0.01 * h)
    # Output layer: (TB, H_pad) @ (H_pad, OUT_PAD) -> lane-dense tile in vregs.
    logits = jnp.dot(h.astype(w2_ref.dtype), w2_ref[...],
                     preferred_element_type=jnp.float32)
    logits = logits + b2_ref[...]
    # Numerically stable sigmoid via EUP tanh: sigmoid(x) = 0.5*(1 + tanh(x/2)).
    sig = 0.5 * (jnp.tanh(0.5 * logits) + 1.0)
    # Store only the real output column(s): narrow HBM writeback (d_out wide),
    # not the 128-lane padded compute tile.
    o_ref[...] = sig[:, : o_ref.shape[1]].astype(o_ref.dtype)


# ---------------------------------------------------------------------------
# One-time parameter preprocessing (hoisted out of the per-call hot path)
# ---------------------------------------------------------------------------
def prepare_params(w1, b1, w2, b2, *, use_bf16=False):
    """Pad feature dims to lane multiples of 128 and (optionally) cast the MXU
    operands to bf16. Zero padding is exact: padded hidden units get bias 0 ->
    leaky_relu(0) = 0 -> zero rows of w2. Biases stay f32 (activation math is
    f32 on all chips). Call once at init, reuse per forward."""
    d_in, hidden = w1.shape
    d_out = w2.shape[1]
    b1 = b1.reshape(1, hidden).astype(jnp.float32)
    b2 = b2.reshape(1, d_out).astype(jnp.float32)

    h_pad = _round_up(hidden, LANE)
    out_pad = _round_up(d_out, LANE)
    w1p = jnp.pad(w1, ((0, 0), (0, h_pad - hidden)))
    b1p = jnp.pad(b1, ((0, 0), (0, h_pad - hidden)))
    w2p = jnp.pad(w2, ((0, h_pad - hidden), (0, out_pad - d_out)))
    b2p = jnp.pad(b2, ((0, 0), (0, out_pad - d_out)))

    op_dtype = jnp.bfloat16 if use_bf16 else jnp.float32
    w1p = w1p.astype(op_dtype)
    w2p = w2p.astype(op_dtype)

    return {
        "w1": w1p, "b1": b1p, "w2": w2p, "b2": b2p,
        "d_in": d_in, "d_out": d_out,
        "h_pad": h_pad, "out_pad": out_pad,
        "op_dtype": op_dtype,
    }


# ---------------------------------------------------------------------------
# Forward wrapper
# ---------------------------------------------------------------------------
def discriminator_forward(x, params, *, block_b=None):
    """x: (B, input_size) f32. params: output of prepare_params()."""
    B, d_in = x.shape
    assert d_in == params["d_in"]
    d_out = params["d_out"]
    h_pad = params["h_pad"]
    out_pad = params["out_pad"]
    w1p, b1p, w2p, b2p = params["w1"], params["b1"], params["w2"], params["b2"]

    # Batch tile: multiple of 16 sublanes, capped at 2048 rows, and sized so
    # there are >=2 grid steps when the batch allows it (v7x megacore).
    if block_b is None:
        block_b = min(max(_round_up(-(-B // 2), SUB), SUB), 2048)
    block_b = max(_round_up(block_b, SUB), SUB)

    b_padded = _round_up(B, block_b)
    xp = x if b_padded == B else jnp.pad(x, ((0, b_padded - B), (0, 0)))
    # bf16 MXU operands halve the dominant x HBM read stream (input quantization;
    # accumulation stays f32 in-kernel).
    xp = xp.astype(params["op_dtype"])

    grid = (b_padded // block_b,)
    itemsize = jnp.dtype(params["op_dtype"]).itemsize
    cost = pl.CostEstimate(
        flops=2 * b_padded * (d_in * h_pad + h_pad * out_pad),
        transcendentals=b_padded * out_pad,
        bytes_accessed=(b_padded * d_in * itemsize
                        + d_in * h_pad * itemsize + h_pad * out_pad * itemsize
                        + (h_pad + out_pad) * 4
                        + b_padded * d_out * 4),
    )

    out = pl.pallas_call(
        discriminator_kernel,
        out_shape=jax.ShapeDtypeStruct((b_padded, d_out), jnp.float32),
        grid=grid,
        in_specs=[
            pl.BlockSpec((block_b, d_in), lambda i: (i, 0)),    # x: tiled over batch
            pl.BlockSpec((d_in, h_pad), lambda i: (0, 0)),      # w1: resident
            pl.BlockSpec((1, h_pad), lambda i: (0, 0)),         # b1: resident
            pl.BlockSpec((h_pad, out_pad), lambda i: (0, 0)),   # w2: resident
            pl.BlockSpec((1, out_pad), lambda i: (0, 0)),       # b2: resident
        ],
        out_specs=pl.BlockSpec((block_b, d_out), lambda i: (i, 0)),  # narrow store
        compiler_params=pltpu.CompilerParams(
            dimension_semantics=("parallel",)),  # megacore sharding on v7x
        cost_estimate=cost,
    )(xp, w1p, b1p, w2p, b2p)

    return out if b_padded == B else out[:B]


# ---------------------------------------------------------------------------
# Init + pure-JAX reference
# ---------------------------------------------------------------------------
def init_params(key, input_size, hidden_dim, output_size):
    """Deterministic init mimicking nn.Linear's uniform(-1/sqrt(fan_in), 1/sqrt(fan_in))."""
    k1, k2, k3, k4 = jax.random.split(key, 4)
    bound1 = 1.0 / jnp.sqrt(input_size)
    bound2 = 1.0 / jnp.sqrt(hidden_dim)
    w1 = jax.random.uniform(k1, (input_size, hidden_dim), jnp.float32, -bound1, bound1)
    b1 = jax.random.uniform(k2, (1, hidden_dim), jnp.float32, -bound1, bound1)
    w2 = jax.random.uniform(k3, (hidden_dim, output_size), jnp.float32, -bound2, bound2)
    b2 = jax.random.uniform(k4, (1, output_size), jnp.float32, -bound2, bound2)
    return w1, b1, w2, b2


def reference_forward(x, w1, b1, w2, b2):
    h = x @ w1 + b1
    h = jnp.where(h > 0, h, 0.01 * h)
    logits = h @ w2 + b2
    return jax.nn.sigmoid(logits)


if __name__ == "__main__":
    # Small shapes consistent with the module: batch=8, input_size=16,
    # hidden_dim=32, output_size=1.
    batch, input_size, hidden_dim, output_size = 8, 16, 32, 1

    key = jax.random.PRNGKey(0)
    kx, kp = jax.random.split(key)
    x = jax.random.normal(kx, (batch, input_size), jnp.float32)
    w1, b1, w2, b2 = init_params(kp, input_size, hidden_dim, output_size)
    ref = reference_forward(x, w1, b1, w2, b2)

    # f32-operand path (tight tolerance; tanh-form sigmoid is exact to f32 rounding).
    params_f32 = prepare_params(w1, b1, w2, b2, use_bf16=False)
    out = jax.block_until_ready(discriminator_forward(x, params_f32))
    assert out.shape == (batch, output_size)
    assert jnp.allclose(out, ref, atol=1e-4, rtol=0.0), float(jnp.max(jnp.abs(out - ref)))

    # bf16 MXU-operand path (v5e/v6e/v7x throughput); looser tolerance for bf16 inputs.
    params_bf16 = prepare_params(w1, b1, w2, b2, use_bf16=True)
    out_bf16 = jax.block_until_ready(discriminator_forward(x, params_bf16))
    assert out_bf16.shape == (batch, output_size)
    assert jnp.allclose(out_bf16, ref, atol=3e-2, rtol=0.0), float(jnp.max(jnp.abs(out_bf16 - ref)))

    # Multi-tile grid path (ragged batch, block_b forced small) to exercise
    # the tiled/padded-batch code path.
    batch2 = 40
    x2 = jax.random.normal(jax.random.PRNGKey(1), (batch2, input_size), jnp.float32)
    ref2 = reference_forward(x2, w1, b1, w2, b2)
    out2 = jax.block_until_ready(discriminator_forward(x2, params_f32, block_b=16))
    assert out2.shape == (batch2, output_size)
    assert jnp.allclose(out2, ref2, atol=1e-4, rtol=0.0), float(jnp.max(jnp.abs(out2 - ref2)))

    print("KERNEL_OK")
</pallas_src>

<mosaic_0001>
module attributes {stable_mosaic.version = 11 : i64} {
  func.func @discriminator_kernel(%arg0: i32, %arg1: memref<16x16xf32, #tpu.memory_space<vmem>>, %arg2: memref<16x128xf32, #tpu.memory_space<vmem>>, %arg3: memref<1x128xf32, #tpu.memory_space<vmem>>, %arg4: memref<128x128xf32, #tpu.memory_space<vmem>>, %arg5: memref<1x128xf32, #tpu.memory_space<vmem>>, %arg6: memref<16x1xf32, #tpu.memory_space<vmem>>) attributes {dimension_semantics = [#tpu.dimension_semantics<parallel>], iteration_bounds = array<i64: 1>, scalar_prefetch = 0 : i64, scratch_operands = 0 : i64, tpu.core_type = #tpu.core_type<tc>, window_params = [{transform_indices = @transform_0, window_bounds = array<i64: 16, 16>}, {pipeline_mode = #tpu.pipeline_mode<synchronous>, transform_indices = @transform_1, window_bounds = array<i64: 16, 128>}, {pipeline_mode = #tpu.pipeline_mode<synchronous>, transform_indices = @transform_2, window_bounds = array<i64: 1, 128>}, {pipeline_mode = #tpu.pipeline_mode<synchronous>, transform_indices = @transform_3, window_bounds = array<i64: 128, 128>}, {pipeline_mode = #tpu.pipeline_mode<synchronous>, transform_indices = @transform_4, window_bounds = array<i64: 1, 128>}, {transform_indices = @transform_5, window_bounds = array<i64: 16, 1>}]} {
    %c0 = arith.constant 0 : index
    %c0_0 = arith.constant 0 : index
    %0 = vector.load %arg1[%c0, %c0_0] : memref<16x16xf32, #tpu.memory_space<vmem>>, vector<16x16xf32>
    %c0_1 = arith.constant 0 : index
    %c0_2 = arith.constant 0 : index
    %1 = vector.load %arg2[%c0_1, %c0_2] : memref<16x128xf32, #tpu.memory_space<vmem>>, vector<16x128xf32>
    %cst = arith.constant dense<0.000000e+00> : vector<16x128xf32>
    %2 = tpu.matmul %0, %1, %cst {dimension_numbers = #tpu.dot_dimension_numbers<[1], [0], [0], [1], [0, 0, 1, 1], [], []>} : vector<16x16xf32>, vector<16x128xf32>, vector<16x128xf32> -> vector<16x128xf32>
    %c0_3 = arith.constant 0 : index
    %c0_4 = arith.constant 0 : index
    %3 = vector.load %arg3[%c0_3, %c0_4] : memref<1x128xf32, #tpu.memory_space<vmem>>, vector<1x128xf32>
    %4 = vector.broadcast %3 : vector<1x128xf32> to vector<16x128xf32>
    %5 = arith.addf %2, %4 : vector<16x128xf32>
    %cst_5 = arith.constant 0.00999999977 : f32
    %6 = vector.broadcast %cst_5 : f32 to vector<16x128xf32>
    %7 = arith.mulf %6, %5 : vector<16x128xf32>
    %8 = arith.maximumf %5, %7 : vector<16x128xf32>
    %c0_6 = arith.constant 0 : index
    %c0_7 = arith.constant 0 : index
    %9 = vector.load %arg4[%c0_6, %c0_7] : memref<128x128xf32, #tpu.memory_space<vmem>>, vector<128x128xf32>
    %cst_8 = arith.constant dense<0.000000e+00> : vector<16x128xf32>
    %10 = tpu.matmul %8, %9, %cst_8 {dimension_numbers = #tpu.dot_dimension_numbers<[1], [0], [0], [1], [0, 0, 1, 1], [], []>} : vector<16x128xf32>, vector<128x128xf32>, vector<16x128xf32> -> vector<16x128xf32>
    %c0_9 = arith.constant 0 : index
    %c0_10 = arith.constant 0 : index
    %11 = vector.load %arg5[%c0_9, %c0_10] : memref<1x128xf32, #tpu.memory_space<vmem>>, vector<1x128xf32>
    %12 = vector.broadcast %11 : vector<1x128xf32> to vector<16x128xf32>
    %13 = arith.addf %10, %12 : vector<16x128xf32>
    %cst_11 = arith.constant 5.000000e-01 : f32
    %14 = vector.broadcast %cst_11 : f32 to vector<16x128xf32>
    %15 = arith.mulf %14, %13 : vector<16x128xf32>
    %16 = math.tanh %15 : vector<16x128xf32>
    %cst_12 = arith.constant 1.000000e+00 : f32
    %17 = vector.broadcast %cst_12 : f32 to vector<16x128xf32>
    %18 = arith.addf %16, %17 : vector<16x128xf32>
    %cst_13 = arith.constant 5.000000e-01 : f32
    %19 = vector.broadcast %cst_13 : f32 to vector<16x128xf32>
    %20 = arith.mulf %19, %18 : vector<16x128xf32>
    %21 = vector.extract_strided_slice %20 {offsets = [0, 0], sizes = [16, 1], strides = [1, 1]} : vector<16x128xf32> to vector<16x1xf32>
    %c0_14 = arith.constant 0 : index
    %c0_15 = arith.constant 0 : index
    %22 = vector.load %arg6[%c0_14, %c0_15] : memref<16x1xf32, #tpu.memory_space<vmem>>, vector<16x1xf32>
    tpu.vector_store %arg6[%c0_14, %c0_15], %21 {strides = array<i32>} : memref<16x1xf32, #tpu.memory_space<vmem>>, vector<16x1xf32>,
    return
  }
  func.func @transform_0(%arg0: i32) -> (i32, i32) {
    %c0_i32 = arith.constant 0 : i32
    %c0_i32_0 = arith.constant 0 : i32
    return %arg0, %c0_i32 : i32, i32
  }
  func.func @transform_1(%arg0: i32) -> (i32, i32) {
    %c0_i32 = arith.constant 0 : i32
    %c0_i32_0 = arith.constant 0 : i32
    %c0_i32_1 = arith.constant 0 : i32
    return %c0_i32, %c0_i32_0 : i32, i32
  }
  func.func @transform_2(%arg0: i32) -> (i32, i32) {
    %c0_i32 = arith.constant 0 : i32
    %c0_i32_0 = arith.constant 0 : i32
    %c0_i32_1 = arith.constant 0 : i32
    return %c0_i32, %c0_i32_0 : i32, i32
  }
  func.func @transform_3(%arg0: i32) -> (i32, i32) {
    %c0_i32 = arith.constant 0 : i32
    %c0_i32_0 = arith.constant 0 : i32
    %c0_i32_1 = arith.constant 0 : i32
    return %c0_i32, %c0_i32_0 : i32, i32
  }
  func.func @transform_4(%arg0: i32) -> (i32, i32) {
    %c0_i32 = arith.constant 0 : i32
    %c0_i32_0 = arith.constant 0 : i32
    %c0_i32_1 = arith.constant 0 : i32
    return %c0_i32, %c0_i32_0 : i32, i32
  }
  func.func @transform_5(%arg0: i32) -> (i32, i32) {
    %c0_i32 = arith.constant 0 : i32
    %c0_i32_0 = arith.constant 0 : i32
    return %arg0, %c0_i32 : i32, i32
  }
}

</mosaic_0001>

<llo_original>
// kernel: tpu_custom_call.1
$region0: #{tpu_custom_call.1}
  #allocation0 [shape = 'u32[]', space=smem, size = 0x4, offset = 0x4, fixed_abs, tag = 'smem constant byte address 0x4 - core index']
  #allocation1 [shape = 'u32[144,128]{1,0:T(1,128)}', space=vmem, size = 0x12000, scoped, tag = 'internal scratch']
  %s0 = inlined_call_operand.hbm [shape: f32[16,16], index: 0, kind: input, shape index: {}]
  %s1 = inlined_call_operand.hbm [shape: f32[16,128], index: 1, kind: input, shape index: {}]
  %s2 = inlined_call_operand.vmem [shape: f32[1,128], index: 2, kind: input, shape index: {}]
  %s3 = inlined_call_operand.hbm [shape: f32[128,128], index: 3, kind: input, shape index: {}]
  %s4 = inlined_call_operand.vmem [shape: f32[1,128], index: 4, kind: input, shape index: {}]
  %s5 = inlined_call_operand.vmem [shape: f32[16,1], index: 5, kind: output, shape index: {}]
  %s6 = sld [smem:[#allocation0]]
  $region42: #{tpu_custom_call.1} parent=0
    _
  %s8 = ssub.s32 1, %s6
  %s9 = scalar_select 0, %s8, %s6
  $region1: #{tpu_custom_call.1} parent=0
    #allocation2 [shape = 'u8[8192]{0}', space=vmem, size = 0x2000, scoped, tag = 'input window, operand 0, single buffered']
    #allocation3 [shape = 's32[1]{0}', space=sflag, size = 0x4, scoped, tag = 'scoped memory for tpu_custom_call.1']
    #allocation4 [shape = 'u8[8192]{0}', space=vmem, size = 0x2000, scoped, tag = 'input window, operand 1, single buffered']
    #allocation5 [shape = 's32[1]{0}', space=sflag, size = 0x4, scoped, tag = 'scoped memory for tpu_custom_call.1']
    #allocation6 [shape = 'u8[65536]{0}', space=vmem, size = 0x10000, scoped, tag = 'input window, operand 3, single buffered']
    %10 = vsyncpa [#allocation3], 0
    %11 = vsyncpa [#allocation5], 0
    // Predicated region
    $region2: #{tpu_custom_call.1} parent=1 // pred_check
      _
    $region3: #{tpu_custom_call.1} parent=1 // pred_check_branch
      %13 = sbr.rel (0) target = $region5
    $region4: #{tpu_custom_call.1} parent=1 // pred_region
      %s15 = ssub.s32 256, 256
      %16 = vsyncadd [#allocation3], %s15
      %s17 = sshll.u32 [#allocation2], 4
      %s18 = int_to_ptr.vmem [resolvable:$true] %s17
      %23 = dma.hbm_to_vmem [thread:$0]  %s0, 256, %s18, [#allocation3], 128, 128, 8
    $region5: #{tpu_custom_call.1} parent=1 // pred_fallthru
      _
    // Predicated region
    $region6: #{tpu_custom_call.1} parent=1 // pred_check
      _
    $region7: #{tpu_custom_call.1} parent=1 // pred_check_branch
      %25 = sbr.rel (0) target = $region9
    $region8: #{tpu_custom_call.1} parent=1 // pred_region
      %s27 = ssub.s32 256, 256
      %28 = vsyncadd [#allocation5], %s27
      %s29 = sshll.u32 [#allocation4], 4
      %s30 = int_to_ptr.vmem [resolvable:$true] %s29
      %35 = dma.hbm_to_vmem [thread:$0]  %s1, 256, %s30, [#allocation5], 128, 128, 8
    $region9: #{tpu_custom_call.1} parent=1 // pred_fallthru
      _
    // Predicated region
    $region10: #{tpu_custom_call.1} parent=1 // pred_check
      _
    $region11: #{tpu_custom_call.1} parent=1 // pred_check_branch
      %37 = sbr.rel (0) target = $region13
    $region12: #{tpu_custom_call.1} parent=1 // pred_region
      _
    $region13: #{tpu_custom_call.1} parent=1 // pred_fallthru
      _
    // Predicated region
    $region14: #{tpu_custom_call.1} parent=1 // pred_check
      _
    $region15: #{tpu_custom_call.1} parent=1 // pred_check_branch
      %39 = sbr.rel (0) target = $region17
    $region16: #{tpu_custom_call.1} parent=1 // pred_region
      %s41 = ssub.s32 2048, 2048
      %42 = vsyncadd [#allocation5], %s41
      %s43 = sshll.u32 [#allocation6], 4
      %s44 = int_to_ptr.vmem [resolvable:$true] %s43
      %49 = dma.hbm_to_vmem [thread:$0]  %s3, 2048, %s44, [#allocation5], 128, 128, 8
    $region17: #{tpu_custom_call.1} parent=1 // pred_fallthru
      _
    // Predicated region
    $region18: #{tpu_custom_call.1} parent=1 // pred_check
      _
    $region19: #{tpu_custom_call.1} parent=1 // pred_check_branch
      %51 = sbr.rel (0) target = $region21
    $region20: #{tpu_custom_call.1} parent=1 // pred_region
      _
    $region21: #{tpu_custom_call.1} parent=1 // pred_fallthru
      _
    // Predicated region
    $region22: #{tpu_custom_call.1} parent=1 // pred_check
      _
    $region23: #{tpu_custom_call.1} parent=1 // pred_check_branch
      %53 = sbr.rel (0) target = $region25
    $region24: #{tpu_custom_call.1} parent=1 // pred_region
      %54 = dma.done [#allocation3], 256
    $region25: #{tpu_custom_call.1} parent=1 // pred_fallthru
      _
    // Predicated region
    $region26: #{tpu_custom_call.1} parent=1 // pred_check
      _
    $region27: #{tpu_custom_call.1} parent=1 // pred_check_branch
      %56 = sbr.rel (0) target = $region29
    $region28: #{tpu_custom_call.1} parent=1 // pred_region
      %57 = dma.done [#allocation5], 256
    $region29: #{tpu_custom_call.1} parent=1 // pred_fallthru
      _
    // Predicated region
    $region30: #{tpu_custom_call.1} parent=1 // pred_check
      _
    $region31: #{tpu_custom_call.1} parent=1 // pred_check_branch
      %59 = sbr.rel (0) target = $region33
    $region32: #{tpu_custom_call.1} parent=1 // pred_region
      %60 = dma.done [#allocation5], 2048
    $region33: #{tpu_custom_call.1} parent=1 // pred_fallthru
      _
    %v61 = vld [vmem:[#allocation2] sm:$0xff]
    %v62 = vld [vmem:[#allocation2 + $0x8] sm:$0xff]
    %v63 = vld [vmem:[#allocation4] sm:$0xff]
    %v64 = vld [vmem:[#allocation4 + $0x8] sm:$0xff]
    %v65 = vld [vmem:[%s2] sm:$0x1]
    %v67 = vlaneseq
    %v68 = vshrl.u32 %v67, 7
    %v69 = vsub.s32 0, %v68
    %v70 = vrot.slane %v65, %v69
    %vm72 = vcmask 130048
    %v74 = vsel %vm72, %v61, 0
    %v77 = vsel %vm72, %v62, 0
    %79 = vmatprep.subr.mxu0 0.0
    %80 = vmatpush1.msra.mxu0 %v63
    %81 = vmatprep.subr.mxu0 0.0
    %82 = vmatpush1.msra.mxu0 %v64
    %83 = vmatprep.subr.mxu0 0.0
    %84 = vmatpush1.msra.mxu0 0.0
    %85 = vmatprep.subr.mxu0 0.0
    %86 = vmatpush1.msra.mxu0 0.0
    %87 = vmatprep.subr.mxu0 0.0
    %88 = vmatpush1.msra.mxu0 0.0
    %89 = vmatprep.subr.mxu0 0.0
    %90 = vmatpush1.msra.mxu0 0.0
    %91 = vmatprep.subr.mxu0 0.0
    %92 = vmatpush1.msra.mxu0 0.0
    %93 = vmatprep.subr.mxu0 0.0
    %94 = vmatpush1.msra.mxu0 0.0
    %95 = vmatprep.subr.mxu0 0.0
    %96 = vmatpush1.msra.mxu0 0.0
    %97 = vmatprep.subr.mxu0 0.0
    %98 = vmatpush1.msra.mxu0 0.0
    %99 = vmatprep.subr.mxu0 0.0
    %100 = vmatpush1.msra.mxu0 0.0
    %101 = vmatprep.subr.mxu0 0.0
    %102 = vmatpush1.msra.mxu0 0.0
    %103 = vmatprep.subr.mxu0 0.0
    %104 = vmatpush1.msra.mxu0 0.0
    %105 = vmatprep.subr.mxu0 0.0
    %106 = vmatpush1.msra.mxu0 0.0
    %107 = vmatprep.subr.mxu0 0.0
    %108 = vmatpush1.msra.mxu0 0.0
    %109 = vmatprep.subr.mxu0 0.0
    %110 = vmatpush1.msra.mxu0 0.0
    %111 = vmatprep.subr.mxu0 0.0
    %112 = vmatpush1.msra.mxu0 0.0
    %113 = vmatprep.subr.mxu0 0.0
    %114 = vmatpush1.msra.mxu0 0.0
    %115 = vmatprep.subr.mxu0 0.0
    %116 = vmatpush1.msra.mxu0 0.0
    %117 = vmatprep.subr.mxu0 0.0
    %118 = vmatpush1.msra.mxu0 0.0
    %119 = vmatprep.subr.mxu0 0.0
    %120 = vmatpush1.msra.mxu0 0.0
    %121 = vmatprep.subr.mxu0 0.0
    %122 = vmatpush1.msra.mxu0 0.0
    %123 = vmatprep.subr.mxu0 0.0
    %124 = vmatpush1.msra.mxu0 0.0
    %125 = vmatprep.subr.mxu0 0.0
    %126 = vmatpush1.msra.mxu0 0.0
    %127 = vmatprep.subr.mxu0 0.0
    %128 = vmatpush1.msra.mxu0 0.0
    %129 = vmatprep.subr.mxu0 0.0
    %130 = vmatpush1.msra.mxu0 0.0
    %131 = vmatprep.subr.mxu0 0.0
    %132 = vmatpush1.msra.mxu0 0.0
    %133 = vmatprep.subr.mxu0 0.0
    %134 = vmatpush1.msra.mxu0 0.0
    %135 = vmatprep.subr.mxu0 0.0
    %136 = vmatpush1.msra.mxu0 0.0
    %137 = vmatprep.subr.mxu0 0.0
    %138 = vmatpush1.msra.mxu0 0.0
    %139 = vmatprep.subr.mxu0 0.0
    %140 = vmatpush1.msra.mxu0 0.0
    %141 = vmatprep.subr.mxu0 0.0
    %142 = vmatpush1.msra.mxu0 0.0
    %143 = vmatprep.mubr.f32.mxu0 0.0
    %144 = vmatmul.mubr.f32.gmra.mrb[0].mxu0 %v74
    %v145 = vpop.f32.mrb[0].mxu0
    %v146 = vadd.f32 %v70, %v145
    %v147 = vpop.f32.mrb[0].mxu0
    %148 = vmatprep.mubr.f32.mxu0 0.0
    %149 = vmatmul.mubr.f32.gmra.mrb[0].mxu0 %v77
    %v150 = vpop.f32.mrb[0].mxu0
    %v151 = vadd.f32 %v70, %v150
    %v152 = vpop.f32.mrb[0].mxu0
    %153 = vdwg.mxu0
    %v154 = vmul.f32 %v146, 0.01
    %v155 = vmul.f32 %v151, 0.01
    %v156 = vmax.f32 %v146, %v154
    %v157 = vmax.f32 %v151, %v155
    %v158 = vld [vmem:[#allocation6] sm:$0xff]
    %v159 = vld [vmem:[#allocation6 + $0x8] sm:$0xff]
    %v160 = vld [vmem:[#allocation6 + $0x10] sm:$0xff]
    %v161 = vld [vmem:[#allocation6 + $0x18] sm:$0xff]
    %v162 = vld [vmem:[#allocation6 + $0x20] sm:$0xff]
    %v163 = vld [vmem:[#allocation6 + $0x28] sm:$0xff]
    %v164 = vld [vmem:[#allocation6 + $0x30] sm:$0xff]
    %v165 = vld [vmem:[#allocation6 + $0x38] sm:$0xff]
    %v166 = vld [vmem:[#allocation6 + $0x40] sm:$0xff]
    %v167 = vld [vmem:[#allocation6 + $0x48] sm:$0xff]
    %v168 = vld [vmem:[#allocation6 + $0x50] sm:$0xff]
    %v169 = vld [vmem:[#allocation6 + $0x58] sm:$0xff]
    %v170 = vld [vmem:[#allocation6 + $0x60] sm:$0xff]
    %v171 = vld [vmem:[#allocation6 + $0x68] sm:$0xff]
    %v172 = vld [vmem:[#allocation6 + $0x70] sm:$0xff]
    %v173 = vld [vmem:[#allocation6 + $0x78] sm:$0xff]
    %v174 = vld [vmem:[%s4] sm:$0x1]
    %v176 = vlaneseq
    %v177 = vshrl.u32 %v176, 7
    %v178 = vsub.s32 0, %v177
    %v179 = vrot.slane %v174, %v178
    %181 = vmatprep.subr.mxu0 0.0
    %182 = vmatpush1.msra.mxu0 %v158
    %183 = vmatprep.subr.mxu0 0.0
    %184 = vmatpush1.msra.mxu0 %v159
    %185 = vmatprep.subr.mxu0 0.0
    %186 = vmatpush1.msra.mxu0 %v160
    %187 = vmatprep.subr.mxu0 0.0
    %188 = vmatpush1.msra.mxu0 %v161
    %189 = vmatprep.subr.mxu0 0.0
    %190 = vmatpush1.msra.mxu0 %v162
    %191 = vmatprep.subr.mxu0 0.0
    %192 = vmatpush1.msra.mxu0 %v163
    %193 = vmatprep.subr.mxu0 0.0
    %194 = vmatpush1.msra.mxu0 %v164
    %195 = vmatprep.subr.mxu0 0.0
    %196 = vmatpush1.msra.mxu0 %v165
    %197 = vmatprep.subr.mxu0 0.0
    %198 = vmatpush1.msra.mxu0 %v166
    %199 = vmatprep.subr.mxu0 0.0
    %200 = vmatpush1.msra.mxu0 %v167
    %201 = vmatprep.subr.mxu0 0.0
    %202 = vmatpush1.msra.mxu0 %v168
    %203 = vmatprep.subr.mxu0 0.0
    %204 = vmatpush1.msra.mxu0 %v169
    %205 = vmatprep.subr.mxu0 0.0
    %206 = vmatpush1.msra.mxu0 %v170
    %207 = vmatprep.subr.mxu0 0.0
    %208 = vmatpush1.msra.mxu0 %v171
    %209 = vmatprep.subr.mxu0 0.0
    %210 = vmatpush1.msra.mxu0 %v172
    %211 = vmatprep.subr.mxu0 0.0
    %212 = vmatpush1.msra.mxu0 %v173
    %213 = vmatprep.subr.mxu0 0.0
    %214 = vmatpush1.msra.mxu0 0.0
    %215 = vmatprep.subr.mxu0 0.0
    %216 = vmatpush1.msra.mxu0 0.0
    %217 = vmatprep.subr.mxu0 0.0
    %218 = vmatpush1.msra.mxu0 0.0
    %219 = vmatprep.subr.mxu0 0.0
    %220 = vmatpush1.msra.mxu0 0.0
    %221 = vmatprep.subr.mxu0 0.0
    %222 = vmatpush1.msra.mxu0 0.0
    %223 = vmatprep.subr.mxu0 0.0
    %224 = vmatpush1.msra.mxu0 0.0
    %225 = vmatprep.subr.mxu0 0.0
    %226 = vmatpush1.msra.mxu0 0.0
    %227 = vmatprep.subr.mxu0 0.0
    %228 = vmatpush1.msra.mxu0 0.0
    %229 = vmatprep.subr.mxu0 0.0
    %230 = vmatpush1.msra.mxu0 0.0
    %231 = vmatprep.subr.mxu0 0.0
    %232 = vmatpush1.msra.mxu0 0.0
    %233 = vmatprep.subr.mxu0 0.0
    %234 = vmatpush1.msra.mxu0 0.0
    %235 = vmatprep.subr.mxu0 0.0
    %236 = vmatpush1.msra.mxu0 0.0
    %237 = vmatprep.subr.mxu0 0.0
    %238 = vmatpush1.msra.mxu0 0.0
    %239 = vmatprep.subr.mxu0 0.0
    %240 = vmatpush1.msra.mxu0 0.0
    %241 = vmatprep.subr.mxu0 0.0
    %242 = vmatpush1.msra.mxu0 0.0
    %243 = vmatprep.subr.mxu0 0.0
    %244 = vmatpush1.msra.mxu0 0.0
    %245 = vmatprep.mubr.f32.mxu0 0.0
    %246 = vmatmul.mubr.f32.gmra.mrb[0].mxu0 %v156
    %v247 = vpop.f32.mrb[0].mxu0
    %v248 = vadd.f32 %v179, %v247
    %v249 = vpop.f32.mrb[0].mxu0
    %250 = vmatprep.mubr.f32.mxu0 0.0
    %251 = vmatmul.mubr.f32.gmra.mrb[0].mxu0 %v157
    %v252 = vpop.f32.mrb[0].mxu0
    %v253 = vadd.f32 %v179, %v252
    %v254 = vpop.f32.mrb[0].mxu0
    %255 = vdwg.mxu0
    %v256 = vmul.f32 %v248, 0.5
    %v257 = vmul.f32 %v253, 0.5
    %v258 = vtanh.pop %v256
    %v259 = vtanh.pop %v257
    %v260 = vadd.f32 %v258, 1.0
    %v261 = vadd.f32 %v259, 1.0
    %v262 = vmul.f32 %v260, 0.5
    %v263 = vmul.f32 %v261, 0.5
    %vm264 = vcmask 7168
    %265 = vst.msk [vmem:[%s5] sm:$0xff] %vm264, %v262
    %266 = vst.msk [vmem:[%s5 + $0x8] sm:$0xff] %vm264, %v263
    // Predicated region
    $region34: #{tpu_custom_call.1} parent=1 // pred_check
      _
    $region35: #{tpu_custom_call.1} parent=1 // pred_check_branch
      %268 = sbr.rel (0) target = $region37
    $region36: #{tpu_custom_call.1} parent=1 // pred_region
      _
    $region37: #{tpu_custom_call.1} parent=1 // pred_fallthru
      _
    // Predicated region
    $region38: #{tpu_custom_call.1} parent=1 // pred_check
      _
    $region39: #{tpu_custom_call.1} parent=1 // pred_check_branch
      %270 = sbr.rel (0) target = $region41
    $region40: #{tpu_custom_call.1} parent=1 // pred_region
      _
    $region41: #{tpu_custom_call.1} parent=1 // pred_fallthru
      _
    %271 = vsyncpa [#allocation3], 1
    %272 = vsyncpa [#allocation5], 1

</llo_original>
